<compile_context>
chip_gen: v5e
topology: v5e:2x2
jax: 0.10.0
libtpu: 0.0.40
codegen_flags: <defaults>
</compile_context>

<pallas_src>
import jax
import jax.numpy as jnp
from jax.experimental import pallas as pl
from jax.experimental.pallas import tpu as pltpu


def _round_up(x, m):
    return ((x + m - 1) // m) * m


# ----------------------------- kernel ------------------------------------- #
def mlp_kernel(x_ref, w1_ref, b1_ref, w2_ref, b2_ref, w3_ref, b3_ref, o_ref):
    # Cast the activation tile to the weight dtype *inside* the kernel (no
    # wrapper-side pad/cast pass over x in HBM).
    x = x_ref[...].astype(w1_ref.dtype)
    # Layer 1: Linear (MXU, f32 accumulate) + bias + ReLU (VPU).
    h = jnp.dot(x, w1_ref[...], preferred_element_type=jnp.float32)
    h = jnp.maximum(h + b1_ref[...], 0.0)
    # Dropout(p=0.0) is an identity -> omitted.
    # Layer 2: Linear + bias + ReLU.
    h = jnp.dot(h.astype(w2_ref.dtype), w2_ref[...],
                preferred_element_type=jnp.float32)
    h = jnp.maximum(h + b2_ref[...], 0.0)
    # Layer 3 (output): Linear + bias, no activation.
    y = jnp.dot(h.astype(w3_ref.dtype), w3_ref[...],
                preferred_element_type=jnp.float32) + b3_ref[...]
    o_ref[...] = y.astype(o_ref.dtype)


# ------------------------- one-time param prep ----------------------------- #
def prepare_params(params, *, weight_dtype=jnp.bfloat16):
    """One-time prep (hoisted out of the forward pass).

    Pads the hidden feature axis up to a multiple of 128 (lane-dense MXU /
    vreg tiles; zero padding + ReLU is exact) and casts weights to
    `weight_dtype` for the MXU.  Use weight_dtype=jnp.float32 if near-exact
    Linear outputs are required (the kernel is HBM-bound, so the MXU
    throughput lost is free; just costs 2x resident weight VMEM).
    Input and output feature dims are left at their true widths.
    """
    w1, b1 = params["w1"], params["b1"]   # (in,  hid), (1, hid)
    w2, b2 = params["w2"], params["b2"]   # (hid, hid), (1, hid)
    w3, b3 = params["w3"], params["b3"]   # (hid, out), (1, out)
    input_dim, hidden_dim = w1.shape
    output_dim = w3.shape[1]
    hid_p = _round_up(hidden_dim, 128)

    def pad2(a, rows, cols):
        return jnp.pad(a, ((0, rows - a.shape[0]), (0, cols - a.shape[1])))

    return dict(
        w1=pad2(w1, input_dim, hid_p).astype(weight_dtype),
        b1=pad2(b1, 1, hid_p).astype(jnp.float32),
        w2=pad2(w2, hid_p, hid_p).astype(weight_dtype),
        b2=pad2(b2, 1, hid_p).astype(jnp.float32),
        w3=pad2(w3, hid_p, output_dim).astype(weight_dtype),
        b3=b3.astype(jnp.float32),                      # (1, output_dim)
    )


# ------------------------------ forward ------------------------------------ #
def mlp_forward(x, prep, *, block_m=512):
    """x: [N, input_dim] float32. prep: output of prepare_params()."""
    N, input_dim = x.shape
    w1, b1 = prep["w1"], prep["b1"]
    w2, b2 = prep["w2"], prep["b2"]
    w3, b3 = prep["w3"], prep["b3"]
    assert w1.shape[0] == input_dim, "x feature dim mismatch with prepared params"
    hid_p = w1.shape[1]
    output_dim = w3.shape[1]

    # ---- row tiling ----
    # Only force >=2 row blocks when each block still gets >=128 rows (so a
    # second step is useful work for v7x's dual TensorCores and nearly free on
    # single-TC v5e/v6e).  For small N, one grid step is strictly better.
    if N >= 256:
        n_blocks = max(2, pl.cdiv(N, block_m))
    else:
        n_blocks = pl.cdiv(N, block_m)          # == 1 for N <= block_m
    bm = -(-N // n_blocks)
    bm = _round_up(bm, 128 if bm >= 128 else 16)   # bf16 sublane / MXU alignment

    # ---- VMEM budgeting (generation-aware) ----
    w_bytes = int(w1.nbytes + w2.nbytes + w3.nbytes)
    bias_bytes = int(b1.nbytes + b2.nbytes + b3.nbytes)
    # Single-buffer the (grid-invariant) weights only when they are big enough
    # for double-buffering to matter (keeps the tiny-shape path maximally
    # conservative, saves half the weight VMEM on v7x for large hidden_dim).
    single_buffer_weights = (w_bytes + bias_bytes) > (4 << 20)
    w_copies = 1 if single_buffer_weights else 2

    def vmem_need(bm_):
        io = 2 * (bm_ * input_dim * 4 + bm_ * output_dim * 4)   # double-buffered tiles
        h_live = 2 * bm_ * hid_p * 4                            # live f32 intermediates
        return io + w_copies * (w_bytes + bias_bytes) + h_live

    try:
        vmem_cap = int(pltpu.get_tpu_info().vmem_capacity_bytes)
    except Exception:
        vmem_cap = 64 << 20                      # conservative (v7x per-TC VMEM)
    budget = vmem_cap - (8 << 20)                # leave headroom for the compiler

    # If the tiles do not fit the device budget, shrink the row tile rather
    # than raising the limit past physical VMEM.
    while vmem_need(bm) > budget and bm > 16:
        bm = max(16, _round_up(bm // 2, 16))

    n_blocks = pl.cdiv(N, bm)
    n_pad = n_blocks * bm
    xp = x if n_pad == N else jnp.pad(x, ((0, n_pad - N), (0, 0)))

    need = vmem_need(bm)
    vmem_limit = None
    # Trigger the override below the smallest per-gen scoped default
    # (v5e: 16 MiB; v6e/v7x: 32 MiB) and cap it under physical VMEM.
    if need > (12 << 20):
        vmem_limit = int(min(need * 5 // 4, budget))

    cost = pl.CostEstimate(
        flops=2 * n_pad * (input_dim * hid_p + hid_p * hid_p + hid_p * output_dim),
        transcendentals=0,
        bytes_accessed=(n_pad * input_dim * 4 + n_pad * output_dim * 4
                        + w_bytes + bias_bytes),
    )

    def resident_spec(shape):
        kwargs = {}
        if single_buffer_weights:
            kwargs["pipeline_mode"] = pl.Buffered(1)   # constant index_map operand
        return pl.BlockSpec(shape, lambda i: (0, 0), **kwargs)

    out = pl.pallas_call(
        mlp_kernel,
        out_shape=jax.ShapeDtypeStruct((n_pad, output_dim), jnp.float32),
        grid_spec=pltpu.PrefetchScalarGridSpec(
            num_scalar_prefetch=0,
            grid=(n_blocks,),
            in_specs=[
                # activations tiled over rows; feature dim = full array dim
                pl.BlockSpec((bm, input_dim), lambda i: (i, 0)),
                # weights / biases resident across all grid steps
                resident_spec((input_dim, hid_p)),
                resident_spec((1, hid_p)),
                resident_spec((hid_p, hid_p)),
                resident_spec((1, hid_p)),
                resident_spec((hid_p, output_dim)),
                resident_spec((1, output_dim)),
            ],
            # true-width output (no 128-lane padding of the writeback)
            out_specs=pl.BlockSpec((bm, output_dim), lambda i: (i, 0)),
        ),
        compiler_params=pltpu.CompilerParams(
            dimension_semantics=("parallel",),
            vmem_limit_bytes=vmem_limit,
        ),
        cost_estimate=cost,
    )(xp, w1, b1, w2, b2, w3, b3)

    return out if n_pad == N else out[:N]


# ----------------------------- init / reference ---------------------------- #
def init_params(key, input_dim, hidden_dim, output_dim):
    """Deterministic init. PyTorch Linear weight is (out,in); store transposed."""
    ks = jax.random.split(key, 6)

    def lin(kw, kb, fan_in, fan_out):
        bound = 1.0 / jnp.sqrt(fan_in)
        w = jax.random.uniform(kw, (fan_out, fan_in), jnp.float32, -bound, bound)
        b = jax.random.uniform(kb, (fan_out,), jnp.float32, -bound, bound)
        return w.T, b.reshape(1, fan_out)   # (in, out), (1, out)

    w1, b1 = lin(ks[0], ks[1], input_dim, hidden_dim)
    w2, b2 = lin(ks[2], ks[3], hidden_dim, hidden_dim)
    w3, b3 = lin(ks[4], ks[5], hidden_dim, output_dim)
    return dict(w1=w1, b1=b1, w2=w2, b2=b2, w3=w3, b3=b3)


def mlp_reference(x, p):
    h = jnp.maximum(x @ p["w1"] + p["b1"], 0.0)
    h = jnp.maximum(h @ p["w2"] + p["b2"], 0.0)
    return h @ p["w3"] + p["b3"]


if __name__ == "__main__":
    input_dim, hidden_dim, output_dim = 16, 64, 8   # module default hidden_dim=64
    N = 16  # e.g. 16 graph nodes / batch rows

    key = jax.random.PRNGKey(0)
    kx, kp = jax.random.split(key)
    x = jax.random.normal(kx, (N, input_dim), dtype=jnp.float32)

    raw_params = init_params(kp, input_dim, hidden_dim, output_dim)
    prep = prepare_params(raw_params)     # one-time pad + bf16 cast (hoisted)

    out = mlp_forward(x, prep)
    out = jax.block_until_ready(out)

    ref = mlp_reference(x, raw_params)    # full-f32 reference
    assert out.shape == (N, output_dim)
    # bf16 MXU operands with f32 accumulation: small tolerance vs f32 reference.
    # (Use prepare_params(..., weight_dtype=jnp.float32) for near-exact results.)
    assert jnp.allclose(out, ref, atol=3e-2, rtol=3e-2), \
        f"max abs err {jnp.max(jnp.abs(out - ref))}"

    print("KERNEL_OK")
</pallas_src>

<mosaic_0001>
module attributes {stable_mosaic.version = 11 : i64} {
  func.func @mlp_kernel(%arg0: i32, %arg1: memref<16x16xf32, #tpu.memory_space<vmem>>, %arg2: memref<16x128xbf16, #tpu.memory_space<vmem>>, %arg3: memref<1x128xf32, #tpu.memory_space<vmem>>, %arg4: memref<128x128xbf16, #tpu.memory_space<vmem>>, %arg5: memref<1x128xf32, #tpu.memory_space<vmem>>, %arg6: memref<128x8xbf16, #tpu.memory_space<vmem>>, %arg7: memref<1x8xf32, #tpu.memory_space<vmem>>, %arg8: memref<16x8xf32, #tpu.memory_space<vmem>>) attributes {dimension_semantics = [#tpu.dimension_semantics<parallel>], iteration_bounds = array<i64: 1>, scalar_prefetch = 0 : i64, scratch_operands = 0 : i64, tpu.core_type = #tpu.core_type<tc>, window_params = [{transform_indices = @transform_0, window_bounds = array<i64: 16, 16>}, {pipeline_mode = #tpu.pipeline_mode<synchronous>, transform_indices = @transform_1, window_bounds = array<i64: 16, 128>}, {pipeline_mode = #tpu.pipeline_mode<synchronous>, transform_indices = @transform_2, window_bounds = array<i64: 1, 128>}, {pipeline_mode = #tpu.pipeline_mode<synchronous>, transform_indices = @transform_3, window_bounds = array<i64: 128, 128>}, {pipeline_mode = #tpu.pipeline_mode<synchronous>, transform_indices = @transform_4, window_bounds = array<i64: 1, 128>}, {pipeline_mode = #tpu.pipeline_mode<synchronous>, transform_indices = @transform_5, window_bounds = array<i64: 128, 8>}, {pipeline_mode = #tpu.pipeline_mode<synchronous>, transform_indices = @transform_6, window_bounds = array<i64: 1, 8>}, {transform_indices = @transform_7, window_bounds = array<i64: 16, 8>}]} {
    %c0 = arith.constant 0 : index
    %c0_0 = arith.constant 0 : index
    %0 = vector.load %arg1[%c0, %c0_0] : memref<16x16xf32, #tpu.memory_space<vmem>>, vector<16x16xf32>
    %1 = arith.truncf %0 : vector<16x16xf32> to vector<16x16xbf16>
    %c0_1 = arith.constant 0 : index
    %c0_2 = arith.constant 0 : index
    %2 = vector.load %arg2[%c0_1, %c0_2] : memref<16x128xbf16, #tpu.memory_space<vmem>>, vector<16x128xbf16>
    %cst = arith.constant dense<0.000000e+00> : vector<16x128xf32>
    %3 = tpu.matmul %1, %2, %cst {dimension_numbers = #tpu.dot_dimension_numbers<[1], [0], [0], [1], [0, 0, 1, 1], [], []>} : vector<16x16xbf16>, vector<16x128xbf16>, vector<16x128xf32> -> vector<16x128xf32>
    %c0_3 = arith.constant 0 : index
    %c0_4 = arith.constant 0 : index
    %4 = vector.load %arg3[%c0_3, %c0_4] : memref<1x128xf32, #tpu.memory_space<vmem>>, vector<1x128xf32>
    %5 = vector.broadcast %4 : vector<1x128xf32> to vector<16x128xf32>
    %6 = arith.addf %3, %5 : vector<16x128xf32>
    %cst_5 = arith.constant 0.000000e+00 : f32
    %7 = vector.broadcast %cst_5 : f32 to vector<16x128xf32>
    %8 = arith.maximumf %6, %7 : vector<16x128xf32>
    %9 = arith.truncf %8 : vector<16x128xf32> to vector<16x128xbf16>
    %c0_6 = arith.constant 0 : index
    %c0_7 = arith.constant 0 : index
    %10 = vector.load %arg4[%c0_6, %c0_7] : memref<128x128xbf16, #tpu.memory_space<vmem>>, vector<128x128xbf16>
    %cst_8 = arith.constant dense<0.000000e+00> : vector<16x128xf32>
    %11 = tpu.matmul %9, %10, %cst_8 {dimension_numbers = #tpu.dot_dimension_numbers<[1], [0], [0], [1], [0, 0, 1, 1], [], []>} : vector<16x128xbf16>, vector<128x128xbf16>, vector<16x128xf32> -> vector<16x128xf32>
    %c0_9 = arith.constant 0 : index
    %c0_10 = arith.constant 0 : index
    %12 = vector.load %arg5[%c0_9, %c0_10] : memref<1x128xf32, #tpu.memory_space<vmem>>, vector<1x128xf32>
    %13 = vector.broadcast %12 : vector<1x128xf32> to vector<16x128xf32>
    %14 = arith.addf %11, %13 : vector<16x128xf32>
    %cst_11 = arith.constant 0.000000e+00 : f32
    %15 = vector.broadcast %cst_11 : f32 to vector<16x128xf32>
    %16 = arith.maximumf %14, %15 : vector<16x128xf32>
    %17 = arith.truncf %16 : vector<16x128xf32> to vector<16x128xbf16>
    %c0_12 = arith.constant 0 : index
    %c0_13 = arith.constant 0 : index
    %18 = vector.load %arg6[%c0_12, %c0_13] : memref<128x8xbf16, #tpu.memory_space<vmem>>, vector<128x8xbf16>
    %cst_14 = arith.constant dense<0.000000e+00> : vector<16x8xf32>
    %19 = tpu.matmul %17, %18, %cst_14 {dimension_numbers = #tpu.dot_dimension_numbers<[1], [0], [0], [1], [0, 0, 1, 1], [], []>} : vector<16x128xbf16>, vector<128x8xbf16>, vector<16x8xf32> -> vector<16x8xf32>
    %c0_15 = arith.constant 0 : index
    %c0_16 = arith.constant 0 : index
    %20 = vector.load %arg7[%c0_15, %c0_16] : memref<1x8xf32, #tpu.memory_space<vmem>>, vector<1x8xf32>
    %21 = vector.broadcast %20 : vector<1x8xf32> to vector<16x8xf32>
    %22 = arith.addf %19, %21 : vector<16x8xf32>
    %c0_17 = arith.constant 0 : index
    %c0_18 = arith.constant 0 : index
    %23 = vector.load %arg8[%c0_17, %c0_18] : memref<16x8xf32, #tpu.memory_space<vmem>>, vector<16x8xf32>
    tpu.vector_store %arg8[%c0_17, %c0_18], %22 {strides = array<i32>} : memref<16x8xf32, #tpu.memory_space<vmem>>, vector<16x8xf32>,
    return
  }
  func.func @transform_0(%arg0: i32) -> (i32, i32) {
    %c0_i32 = arith.constant 0 : i32
    %c0_i32_0 = arith.constant 0 : i32
    return %arg0, %c0_i32 : i32, i32
  }
  func.func @transform_1(%arg0: i32) -> (i32, i32) {
    %c0_i32 = arith.constant 0 : i32
    %c0_i32_0 = arith.constant 0 : i32
    %c0_i32_1 = arith.constant 0 : i32
    return %c0_i32, %c0_i32_0 : i32, i32
  }
  func.func @transform_2(%arg0: i32) -> (i32, i32) {
    %c0_i32 = arith.constant 0 : i32
    %c0_i32_0 = arith.constant 0 : i32
    %c0_i32_1 = arith.constant 0 : i32
    return %c0_i32, %c0_i32_0 : i32, i32
  }
  func.func @transform_3(%arg0: i32) -> (i32, i32) {
    %c0_i32 = arith.constant 0 : i32
    %c0_i32_0 = arith.constant 0 : i32
    %c0_i32_1 = arith.constant 0 : i32
    return %c0_i32, %c0_i32_0 : i32, i32
  }
  func.func @transform_4(%arg0: i32) -> (i32, i32) {
    %c0_i32 = arith.constant 0 : i32
    %c0_i32_0 = arith.constant 0 : i32
    %c0_i32_1 = arith.constant 0 : i32
    return %c0_i32, %c0_i32_0 : i32, i32
  }
  func.func @transform_5(%arg0: i32) -> (i32, i32) {
    %c0_i32 = arith.constant 0 : i32
    %c0_i32_0 = arith.constant 0 : i32
    %c0_i32_1 = arith.constant 0 : i32
    return %c0_i32, %c0_i32_0 : i32, i32
  }
  func.func @transform_6(%arg0: i32) -> (i32, i32) {
    %c0_i32 = arith.constant 0 : i32
    %c0_i32_0 = arith.constant 0 : i32
    %c0_i32_1 = arith.constant 0 : i32
    return %c0_i32, %c0_i32_0 : i32, i32
  }
  func.func @transform_7(%arg0: i32) -> (i32, i32) {
    %c0_i32 = arith.constant 0 : i32
    %c0_i32_0 = arith.constant 0 : i32
    return %arg0, %c0_i32 : i32, i32
  }
}

</mosaic_0001>

<llo_original>
// kernel: tpu_custom_call.1
$region0: #{tpu_custom_call.1}
  #allocation0 [shape = 'u32[]', space=smem, size = 0x4, offset = 0x4, fixed_abs, tag = 'smem constant byte address 0x4 - core index']
  #allocation1 [shape = 'u32[72,128]{1,0:T(1,128)}', space=vmem, size = 0x9000, scoped, tag = 'internal scratch']
  %s0 = inlined_call_operand.hbm [shape: f32[16,16], index: 0, kind: input, shape index: {}]
  %s1 = inlined_call_operand.hbm [shape: bf16[16,128], index: 1, kind: input, shape index: {}]
  %s2 = inlined_call_operand.vmem [shape: f32[1,128], index: 2, kind: input, shape index: {}]
  %s3 = inlined_call_operand.vmem [shape: bf16[128,128], index: 3, kind: input, shape index: {}]
  %s4 = inlined_call_operand.vmem [shape: f32[1,128], index: 4, kind: input, shape index: {}]
  %s5 = inlined_call_operand.vmem [shape: bf16[128,8], index: 5, kind: input, shape index: {}]
  %s6 = inlined_call_operand.vmem [shape: f32[1,8], index: 6, kind: input, shape index: {}]
  %s7 = inlined_call_operand.vmem [shape: f32[16,8], index: 7, kind: output, shape index: {}]
  %s8 = sld [smem:[#allocation0]]
  $region46: #{tpu_custom_call.1} parent=0
    _
  %s10 = ssub.s32 1, %s8
  %s11 = scalar_select 0, %s10, %s8
  $region1: #{tpu_custom_call.1} parent=0
    #allocation2 [shape = 'u8[8192]{0}', space=vmem, size = 0x2000, scoped, tag = 'input window, operand 0, single buffered']
    #allocation3 [shape = 's32[1]{0}', space=sflag, size = 0x4, scoped, tag = 'scoped memory for tpu_custom_call.1']
    #allocation4 [shape = 'u8[4096]{0}', space=vmem, size = 0x1000, scoped, tag = 'input window, operand 1, single buffered']
    #allocation5 [shape = 's32[1]{0}', space=sflag, size = 0x4, scoped, tag = 'scoped memory for tpu_custom_call.1']
    %12 = vsyncpa [#allocation3], 0
    %13 = vsyncpa [#allocation5], 0
    // Predicated region
    $region2: #{tpu_custom_call.1} parent=1 // pred_check
      _
    $region3: #{tpu_custom_call.1} parent=1 // pred_check_branch
      %15 = sbr.rel (0) target = $region5
    $region4: #{tpu_custom_call.1} parent=1 // pred_region
      %17 = vsyncadd [#allocation3], 0
      %s18 = sshll.u32 %s0, 4
      %s19 = int_to_ptr.hbm [resolvable:$true] %s18
      %s20 = sshll.u32 [#allocation2], 4
      %s21 = int_to_ptr.vmem [resolvable:$true] %s20
      %26 = dma.hbm_to_vmem [thread:$0]  %s19, 256, %s21, [#allocation3], 128, 128, 8
    $region5: #{tpu_custom_call.1} parent=1 // pred_fallthru
      _
    // Predicated region
    $region6: #{tpu_custom_call.1} parent=1 // pred_check
      _
    $region7: #{tpu_custom_call.1} parent=1 // pred_check_branch
      %28 = sbr.rel (0) target = $region9
    $region8: #{tpu_custom_call.1} parent=1 // pred_region
      %30 = vsyncadd [#allocation5], 0
      %s31 = sshll.u32 %s1, 4
      %s32 = int_to_ptr.hbm [resolvable:$true] %s31
      %s33 = sshll.u32 [#allocation4], 4
      %s34 = int_to_ptr.vmem [resolvable:$true] %s33
      %39 = dma.hbm_to_vmem [thread:$0]  %s32, 128, %s34, [#allocation5], 64, 64, 4
    $region9: #{tpu_custom_call.1} parent=1 // pred_fallthru
      _
    // Predicated region
    $region10: #{tpu_custom_call.1} parent=1 // pred_check
      _
    $region11: #{tpu_custom_call.1} parent=1 // pred_check_branch
      %41 = sbr.rel (0) target = $region13
    $region12: #{tpu_custom_call.1} parent=1 // pred_region
      _
    $region13: #{tpu_custom_call.1} parent=1 // pred_fallthru
      _
    // Predicated region
    $region14: #{tpu_custom_call.1} parent=1 // pred_check
      _
    $region15: #{tpu_custom_call.1} parent=1 // pred_check_branch
      %43 = sbr.rel (0) target = $region17
    $region16: #{tpu_custom_call.1} parent=1 // pred_region
      _
    $region17: #{tpu_custom_call.1} parent=1 // pred_fallthru
      _
    // Predicated region
    $region18: #{tpu_custom_call.1} parent=1 // pred_check
      _
    $region19: #{tpu_custom_call.1} parent=1 // pred_check_branch
      %45 = sbr.rel (0) target = $region21
    $region20: #{tpu_custom_call.1} parent=1 // pred_region
      _
    $region21: #{tpu_custom_call.1} parent=1 // pred_fallthru
      _
    // Predicated region
    $region22: #{tpu_custom_call.1} parent=1 // pred_check
      _
    $region23: #{tpu_custom_call.1} parent=1 // pred_check_branch
      %47 = sbr.rel (0) target = $region25
    $region24: #{tpu_custom_call.1} parent=1 // pred_region
      _
    $region25: #{tpu_custom_call.1} parent=1 // pred_fallthru
      _
    // Predicated region
    $region26: #{tpu_custom_call.1} parent=1 // pred_check
      _
    $region27: #{tpu_custom_call.1} parent=1 // pred_check_branch
      %49 = sbr.rel (0) target = $region29
    $region28: #{tpu_custom_call.1} parent=1 // pred_region
      _
    $region29: #{tpu_custom_call.1} parent=1 // pred_fallthru
      _
    // Predicated region
    $region30: #{tpu_custom_call.1} parent=1 // pred_check
      _
    $region31: #{tpu_custom_call.1} parent=1 // pred_check_branch
      %51 = sbr.rel (0) target = $region33
    $region32: #{tpu_custom_call.1} parent=1 // pred_region
      %53 = dma.done [#allocation3], 256
    $region33: #{tpu_custom_call.1} parent=1 // pred_fallthru
      _
    // Predicated region
    $region34: #{tpu_custom_call.1} parent=1 // pred_check
      _
    $region35: #{tpu_custom_call.1} parent=1 // pred_check_branch
      %55 = sbr.rel (0) target = $region37
    $region36: #{tpu_custom_call.1} parent=1 // pred_region
      %57 = dma.done [#allocation5], 128
    $region37: #{tpu_custom_call.1} parent=1 // pred_fallthru
      _
    %v59 = vld [vmem:[#allocation2] sm:$0xff]
    %v60 = vld [vmem:[#allocation2 + $0x8] sm:$0xff]
    %v61 = vpack.c.bf16 %v60, %v59
    %v62 = vld [vmem:[#allocation4] sm:$0xf]
    %v63 = vld [vmem:[#allocation4 + $0x4] sm:$0xf]
    %v64 = vld [vmem:[%s2] sm:$0x1]
    %v66 = vperm.slane %v64, 0
    %v70 = vunpack.c.l.b16 %v62
    %v71 = vunpack.c.l.b16 %v63
    %v72 = vpack.c.b16 %v71, %v70
    %vm74 = vcmask 130048
    %v76 = vsel %vm74, %v61, 0
    %78 = vmatpush.bf16.msra.mxu0 0
    %79 = vmatpush.bf16.msra.mxu0 0
    %80 = vmatpush.bf16.msra.mxu0 0
    %81 = vmatpush.bf16.msra.mxu0 0
    %82 = vmatpush.bf16.msra.mxu0 0
    %83 = vmatpush.bf16.msra.mxu0 0
    %84 = vmatpush.bf16.msra.mxu0 0
    %85 = vmatpush.bf16.msra.mxu0 %v72
    %86 = vmatmul.bf16.gmra.mxu0 %v76
    %v87 = vpop.f32.mrf.mxu0
    %v88 = vadd.f32 %v66, %v87
    %v89 = vpop.f32.mrf.mxu0
    %v90 = vadd.f32 %v66, %v89
    %91 = vdwg.mxu0
    %v92 = vmax.f32 %v88, 0.0
    %v93 = vmax.f32 %v90, 0.0
    %v94 = vpack.c.bf16 %v93, %v92
    %v95 = vld [vmem:[%s3] sm:$0xf]
    %v96 = vld [vmem:[%s3 + $0x4] sm:$0xf]
    %v97 = vld [vmem:[%s3 + $0x8] sm:$0xf]
    %v98 = vld [vmem:[%s3 + $0xc] sm:$0xf]
    %v99 = vld [vmem:[%s3 + $0x10] sm:$0xf]
    %v100 = vld [vmem:[%s3 + $0x14] sm:$0xf]
    %v101 = vld [vmem:[%s3 + $0x18] sm:$0xf]
    %v102 = vld [vmem:[%s3 + $0x1c] sm:$0xf]
    %v103 = vld [vmem:[%s3 + $0x20] sm:$0xf]
    %v104 = vld [vmem:[%s3 + $0x24] sm:$0xf]
    %v105 = vld [vmem:[%s3 + $0x28] sm:$0xf]
    %v106 = vld [vmem:[%s3 + $0x2c] sm:$0xf]
    %v107 = vld [vmem:[%s3 + $0x30] sm:$0xf]
    %v108 = vld [vmem:[%s3 + $0x34] sm:$0xf]
    %v109 = vld [vmem:[%s3 + $0x38] sm:$0xf]
    %v110 = vld [vmem:[%s3 + $0x3c] sm:$0xf]
    %v111 = vld [vmem:[%s4] sm:$0x1]
    %v113 = vperm.slane %v111, 0
    %v131 = vunpack.c.l.b16 %v95
    %v132 = vunpack.c.l.b16 %v96
    %v133 = vunpack.c.l.b16 %v97
    %v134 = vunpack.c.l.b16 %v98
    %v135 = vunpack.c.l.b16 %v99
    %v136 = vunpack.c.l.b16 %v100
    %v137 = vunpack.c.l.b16 %v101
    %v138 = vunpack.c.l.b16 %v102
    %v139 = vunpack.c.l.b16 %v103
    %v140 = vunpack.c.l.b16 %v104
    %v141 = vunpack.c.l.b16 %v105
    %v142 = vunpack.c.l.b16 %v106
    %v143 = vunpack.c.l.b16 %v107
    %v144 = vunpack.c.l.b16 %v108
    %v145 = vunpack.c.l.b16 %v109
    %v146 = vunpack.c.l.b16 %v110
    %v147 = vpack.c.b16 %v132, %v131
    %v148 = vpack.c.b16 %v134, %v133
    %v149 = vpack.c.b16 %v136, %v135
    %v150 = vpack.c.b16 %v138, %v137
    %v151 = vpack.c.b16 %v140, %v139
    %v152 = vpack.c.b16 %v142, %v141
    %v153 = vpack.c.b16 %v144, %v143
    %v154 = vpack.c.b16 %v146, %v145
    %163 = vmatpush.bf16.msra.mxu0 %v154
    %164 = vmatpush.bf16.msra.mxu0 %v153
    %165 = vmatpush.bf16.msra.mxu0 %v152
    %166 = vmatpush.bf16.msra.mxu0 %v151
    %167 = vmatpush.bf16.msra.mxu0 %v150
    %168 = vmatpush.bf16.msra.mxu0 %v149
    %169 = vmatpush.bf16.msra.mxu0 %v148
    %170 = vmatpush.bf16.msra.mxu0 %v147
    %171 = vmatmul.bf16.gmra.mxu0 %v94
    %v172 = vpop.f32.mrf.mxu0
    %v173 = vadd.f32 %v113, %v172
    %v174 = vpop.f32.mrf.mxu0
    %v175 = vadd.f32 %v113, %v174
    %176 = vdwg.mxu0
    %v177 = vmax.f32 %v173, 0.0
    %v178 = vmax.f32 %v175, 0.0
    %v179 = vpack.c.bf16 %v178, %v177
    %v180 = vld [vmem:[%s5] sm:$0xf]
    %v181 = vld [vmem:[%s5 + $0x4] sm:$0xf]
    %v182 = vld [vmem:[%s5 + $0x8] sm:$0xf]
    %v183 = vld [vmem:[%s5 + $0xc] sm:$0xf]
    %v184 = vld [vmem:[%s5 + $0x10] sm:$0xf]
    %v185 = vld [vmem:[%s5 + $0x14] sm:$0xf]
    %v186 = vld [vmem:[%s5 + $0x18] sm:$0xf]
    %v187 = vld [vmem:[%s5 + $0x1c] sm:$0xf]
    %v188 = vld [vmem:[%s5 + $0x20] sm:$0xf]
    %v189 = vld [vmem:[%s5 + $0x24] sm:$0xf]
    %v190 = vld [vmem:[%s5 + $0x28] sm:$0xf]
    %v191 = vld [vmem:[%s5 + $0x2c] sm:$0xf]
    %v192 = vld [vmem:[%s5 + $0x30] sm:$0xf]
    %v193 = vld [vmem:[%s5 + $0x34] sm:$0xf]
    %v194 = vld [vmem:[%s5 + $0x38] sm:$0xf]
    %v195 = vld [vmem:[%s5 + $0x3c] sm:$0xf]
    %v196 = vld [vmem:[%s6] sm:$0x1]
    %v198 = vperm.slane %v196, 0
    %v216 = vunpack.c.l.b16 %v180
    %v217 = vunpack.c.l.b16 %v181
    %v218 = vunpack.c.l.b16 %v182
    %v219 = vunpack.c.l.b16 %v183
    %v220 = vunpack.c.l.b16 %v184
    %v221 = vunpack.c.l.b16 %v185
    %v222 = vunpack.c.l.b16 %v186
    %v223 = vunpack.c.l.b16 %v187
    %v224 = vunpack.c.l.b16 %v188
    %v225 = vunpack.c.l.b16 %v189
    %v226 = vunpack.c.l.b16 %v190
    %v227 = vunpack.c.l.b16 %v191
    %v228 = vunpack.c.l.b16 %v192
    %v229 = vunpack.c.l.b16 %v193
    %v230 = vunpack.c.l.b16 %v194
    %v231 = vunpack.c.l.b16 %v195
    %v232 = vpack.c.b16 %v217, %v216
    %v233 = vpack.c.b16 %v219, %v218
    %v234 = vpack.c.b16 %v221, %v220
    %v235 = vpack.c.b16 %v223, %v222
    %v236 = vpack.c.b16 %v225, %v224
    %v237 = vpack.c.b16 %v227, %v226
    %v238 = vpack.c.b16 %v229, %v228
    %v239 = vpack.c.b16 %v231, %v230
    %248 = vmatpush.bf16.msra.mxu0 %v239
    %249 = vmatpush.bf16.msra.mxu0 %v238
    %250 = vmatpush.bf16.msra.mxu0 %v237
    %251 = vmatpush.bf16.msra.mxu0 %v236
    %252 = vmatpush.bf16.msra.mxu0 %v235
    %253 = vmatpush.bf16.msra.mxu0 %v234
    %254 = vmatpush.bf16.msra.mxu0 %v233
    %255 = vmatpush.bf16.msra.mxu0 %v232
    %256 = vmatmul.bf16.gmra.mxu0 %v179
    %v257 = vpop.f32.mrf.mxu0
    %v258 = vadd.f32 %v198, %v257
    %v259 = vpop.f32.mrf.mxu0
    %v260 = vadd.f32 %v198, %v259
    %261 = vdwg.mxu0
    %vm262 = vcmask 64512
    %263 = vst.msk [vmem:[%s7] sm:$0xff] %vm262, %v258
    %264 = vst.msk [vmem:[%s7 + $0x8] sm:$0xff] %vm262, %v260
    // Predicated region
    $region38: #{tpu_custom_call.1} parent=1 // pred_check
      _
    $region39: #{tpu_custom_call.1} parent=1 // pred_check_branch
      %266 = sbr.rel (0) target = $region41
    $region40: #{tpu_custom_call.1} parent=1 // pred_region
      _
    $region41: #{tpu_custom_call.1} parent=1 // pred_fallthru
      _
    // Predicated region
    $region42: #{tpu_custom_call.1} parent=1 // pred_check
      _
    $region43: #{tpu_custom_call.1} parent=1 // pred_check_branch
      %268 = sbr.rel (0) target = $region45
    $region44: #{tpu_custom_call.1} parent=1 // pred_region
      _
    $region45: #{tpu_custom_call.1} parent=1 // pred_fallthru
      _
    %269 = vsyncpa [#allocation3], 1
    %270 = vsyncpa [#allocation5], 1

</llo_original>
